<compile_context>
chip_gen: v5e
topology: v5e:2x2
jax: 0.10.0
libtpu: 0.0.40
codegen_flags: <defaults>
</compile_context>

<pallas_src>
import functools

import jax
import jax.numpy as jnp
from jax.experimental import pallas as pl
from jax.experimental.pallas import tpu as pltpu

INPUT_DIM = 501
ARCH = [64, 32]
OUTPUT_DIM = 1
NEG_SLOPE = 0.2
LANE = 128


def _leaky_relu(x, slope=NEG_SLOPE):
    return jnp.where(x > 0, x, slope * x)


def _round_up(n, m):
    return (n + m - 1) // m * m


def ranknet_kernel(x_ref, w1_ref, b1_ref, w2_ref, b2_ref, w3r_ref, b3_ref, o_ref):
    """Fused MLP on one (tm, K) batch tile; writes a lane-dense (1, tm) row.

    Matmul inputs are bf16 (MXU fast path); accumulation, bias adds and
    LeakyReLU are f32.
    """
    x = x_ref[...]                                                    # (tm, K) bf16

    # Layer 1: Linear(K -> 64) + LeakyReLU(0.2).
    h1 = jnp.dot(x, w1_ref[...], preferred_element_type=jnp.float32) + b1_ref[...]
    h1 = _leaky_relu(h1)                                              # (tm, 64) f32

    # Layer 2: Linear(64 -> 32) + LeakyReLU(0.2).
    h2 = jnp.dot(h1.astype(jnp.bfloat16), w2_ref[...],
                 preferred_element_type=jnp.float32) + b2_ref[...]
    h2 = _leaky_relu(h2)                                              # (tm, 32) f32

    # Output layer: Linear(32 -> 1), computed transposed so the store is
    # lane-dense:  (1, 32) contracted with (tm, 32) on the last dim -> (1, tm).
    out_row = jax.lax.dot_general(
        w3r_ref[...], h2.astype(jnp.bfloat16),
        dimension_numbers=(((1,), (1,)), ((), ())),
        preferred_element_type=jnp.float32,
    ) + b3_ref[...]                                                   # (1, tm) f32

    o_ref[...] = out_row.astype(o_ref.dtype)


@functools.partial(jax.jit, static_argnames=("tm",))
def ranknet_forward(x, params, *, tm=2048):
    """RankNet forward.  x: (batch, 501) — pass bf16 for peak throughput.

    tm is the batch tile; 2048 is safe on v5e/v6e/v7x (v7x users may pass
    4096).  Large batches are automatically split into >= 2 tiles so both
    v7x TensorCores receive work via the "parallel" grid axis.
    """
    w1, b1, w2, b2, w3, b3 = params
    batch, k = x.shape

    # --- dtypes: bf16 matmul inputs, f32 biases / accumulation. -------------
    if x.dtype != jnp.bfloat16:
        # One extra (fusable) pass over x; ship bf16 upstream to avoid it.
        x = x.astype(jnp.bfloat16)
    w1 = w1.astype(jnp.bfloat16)
    w2 = w2.astype(jnp.bfloat16)
    w3r = w3.reshape(1, -1).astype(jnp.bfloat16)      # (1, 32) row for transposed matmul
    b1 = b1.reshape(1, -1).astype(jnp.float32)
    b2 = b2.reshape(1, -1).astype(jnp.float32)
    b3 = b3.reshape(1, -1).astype(jnp.float32)

    # If the caller pre-padded x's feature dim (e.g. 501 -> 512 with zero
    # columns), pad w1's rows to match.  (Fixes the review-flagged mismatch.)
    if w1.shape[0] != k:
        if w1.shape[0] > k:
            raise ValueError(f"x has {k} features but w1 expects {w1.shape[0]}")
        w1 = jnp.pad(w1, ((0, k - w1.shape[0]), (0, 0)))

    # --- batch tiling (no jnp.pad of x) --------------------------------------
    tm = max(8, _round_up(tm, 8))
    if batch <= 2 * LANE:
        tm_eff = batch                        # single exact block; no OOB reads
    else:
        # Keep >= 2 tiles so a dual-TensorCore part (v7x) keeps both cores busy.
        tm_eff = min(tm, _round_up(pl.cdiv(batch, 2), LANE))
    num_tiles = pl.cdiv(batch, tm_eff)        # tail block (if any) is OOB-padded

    full = lambda a: pl.BlockSpec(a.shape, lambda i: (0,) * a.ndim)

    flops = 2 * batch * (k * ARCH[0] + ARCH[0] * ARCH[1] + ARCH[1] * OUTPUT_DIM)
    bytes_accessed = (
        x.size * x.dtype.itemsize
        + (w1.size + w2.size + w3r.size) * 2
        + (b1.size + b2.size + b3.size) * 4
        + num_tiles * tm_eff * 4
    )

    out2d = pl.pallas_call(
        ranknet_kernel,
        out_shape=jax.ShapeDtypeStruct((num_tiles, tm_eff), jnp.float32),
        grid=(num_tiles,),
        in_specs=[
            pl.BlockSpec((tm_eff, k), lambda i: (i, 0)),   # x batch tile (bf16)
            full(w1), full(b1),                            # layer 1 (VMEM-resident)
            full(w2), full(b2),                            # layer 2
            full(w3r), full(b3),                           # output layer
        ],
        out_specs=pl.BlockSpec((1, tm_eff), lambda i: (i, 0)),   # lane-dense row
        compiler_params=pltpu.CompilerParams(
            dimension_semantics=("parallel",),
        ),
        cost_estimate=pl.CostEstimate(
            flops=flops, transcendentals=0, bytes_accessed=bytes_accessed),
    )(x, w1, b1, w2, b2, w3r, b3)

    # (num_tiles, tm) rows are consecutive batch slices -> flatten, drop pad rows.
    return out2d.reshape(-1)[:batch].reshape(batch, OUTPUT_DIM)


def init_params(key):
    """Deterministic init mimicking PyTorch Linear (uniform +/- 1/sqrt(fan_in))."""
    dims = [INPUT_DIM] + ARCH + [OUTPUT_DIM]
    params = []
    for d_in, d_out in zip(dims[:-1], dims[1:]):
        key, kw, kb = jax.random.split(key, 3)
        bound = 1.0 / (d_in ** 0.5)
        w = jax.random.uniform(kw, (d_in, d_out), jnp.float32, -bound, bound)
        b = jax.random.uniform(kb, (1, d_out), jnp.float32, -bound, bound)
        params.extend([w, b])
    return tuple(params)


def ranknet_reference(x, params):
    """Pure-JAX f32 reference matching the PyTorch module."""
    w1, b1, w2, b2, w3, b3 = params
    h = _leaky_relu(x @ w1 + b1)
    h = _leaky_relu(h @ w2 + b2)
    return h @ w3 + b3


def ranknet_reference_bf16(x, params):
    """Reference mirroring the kernel's bf16-matmul-inputs / f32-accum path."""
    q = lambda a: a.astype(jnp.bfloat16).astype(jnp.float32)
    w1, b1, w2, b2, w3, b3 = params
    h = _leaky_relu(q(x) @ q(w1) + b1)
    h = _leaky_relu(q(h) @ q(w2) + b2)
    return q(h) @ q(w3) + b3


if __name__ == "__main__":
    key = jax.random.PRNGKey(0)
    key, kx = jax.random.split(key)

    batch = 8
    x = jax.random.normal(kx, (batch, INPUT_DIM), jnp.float32)
    params = init_params(key)

    out = ranknet_forward(x, params)
    out = jax.block_until_ready(out)
    assert out.shape == (batch, OUTPUT_DIM)

    # Tight check against a reference using the same bf16 matmul inputs.
    ref_q = ranknet_reference_bf16(x, params)
    assert jnp.allclose(out, ref_q, atol=2e-3, rtol=2e-3), "mismatch vs bf16-input reference"

    # Loose sanity check against the full-f32 (PyTorch-equivalent) reference;
    # the only difference is bf16 quantization of the matmul inputs.
    ref = ranknet_reference(x, params)
    assert jnp.allclose(out, ref, atol=5e-2, rtol=5e-2), "mismatch vs f32 reference"

    print("KERNEL_OK")
</pallas_src>

<mosaic_0001>
module attributes {stable_mosaic.version = 11 : i64} {
  func.func @ranknet_kernel(%arg0: i32, %arg1: memref<8x501xbf16, #tpu.memory_space<vmem>>, %arg2: memref<501x64xbf16, #tpu.memory_space<vmem>>, %arg3: memref<1x64xf32, #tpu.memory_space<vmem>>, %arg4: memref<64x32xbf16, #tpu.memory_space<vmem>>, %arg5: memref<1x32xf32, #tpu.memory_space<vmem>>, %arg6: memref<1x32xbf16, #tpu.memory_space<vmem>>, %arg7: memref<1x1xf32, #tpu.memory_space<vmem>>, %arg8: memref<1x8xf32, #tpu.memory_space<vmem>>) attributes {dimension_semantics = [#tpu.dimension_semantics<parallel>], iteration_bounds = array<i64: 1>, scalar_prefetch = 0 : i64, scratch_operands = 0 : i64, tpu.core_type = #tpu.core_type<tc>, window_params = [{transform_indices = @transform_0, window_bounds = array<i64: 8, 501>}, {pipeline_mode = #tpu.pipeline_mode<synchronous>, transform_indices = @transform_1, window_bounds = array<i64: 501, 64>}, {pipeline_mode = #tpu.pipeline_mode<synchronous>, transform_indices = @transform_2, window_bounds = array<i64: 1, 64>}, {pipeline_mode = #tpu.pipeline_mode<synchronous>, transform_indices = @transform_3, window_bounds = array<i64: 64, 32>}, {pipeline_mode = #tpu.pipeline_mode<synchronous>, transform_indices = @transform_4, window_bounds = array<i64: 1, 32>}, {pipeline_mode = #tpu.pipeline_mode<synchronous>, transform_indices = @transform_5, window_bounds = array<i64: 1, 32>}, {pipeline_mode = #tpu.pipeline_mode<synchronous>, transform_indices = @transform_6, window_bounds = array<i64: 1, 1>}, {transform_indices = @transform_7, window_bounds = array<i64: 1, 8>}]} {
    %c0 = arith.constant 0 : index
    %c0_0 = arith.constant 0 : index
    %0 = vector.load %arg1[%c0, %c0_0] : memref<8x501xbf16, #tpu.memory_space<vmem>>, vector<8x501xbf16>
    %c0_1 = arith.constant 0 : index
    %c0_2 = arith.constant 0 : index
    %1 = vector.load %arg2[%c0_1, %c0_2] : memref<501x64xbf16, #tpu.memory_space<vmem>>, vector<501x64xbf16>
    %cst = arith.constant dense<0.000000e+00> : vector<8x64xf32>
    %2 = tpu.matmul %0, %1, %cst {dimension_numbers = #tpu.dot_dimension_numbers<[1], [0], [0], [1], [0, 0, 1, 1], [], []>} : vector<8x501xbf16>, vector<501x64xbf16>, vector<8x64xf32> -> vector<8x64xf32>
    %c0_3 = arith.constant 0 : index
    %c0_4 = arith.constant 0 : index
    %3 = vector.load %arg3[%c0_3, %c0_4] : memref<1x64xf32, #tpu.memory_space<vmem>>, vector<1x64xf32>
    %4 = vector.broadcast %3 : vector<1x64xf32> to vector<8x64xf32>
    %5 = arith.addf %2, %4 : vector<8x64xf32>
    %cst_5 = arith.constant 0.000000e+00 : f32
    %6 = vector.broadcast %cst_5 : f32 to vector<8x64xf32>
    %7 = arith.cmpf ogt, %5, %6 : vector<8x64xf32>
    %cst_6 = arith.constant 2.000000e-01 : f32
    %8 = vector.broadcast %cst_6 : f32 to vector<8x64xf32>
    %9 = arith.mulf %8, %5 : vector<8x64xf32>
    %10 = arith.select %7, %5, %9 : vector<8x64xi1>, vector<8x64xf32>
    %11 = arith.truncf %10 : vector<8x64xf32> to vector<8x64xbf16>
    %c0_7 = arith.constant 0 : index
    %c0_8 = arith.constant 0 : index
    %12 = vector.load %arg4[%c0_7, %c0_8] : memref<64x32xbf16, #tpu.memory_space<vmem>>, vector<64x32xbf16>
    %cst_9 = arith.constant dense<0.000000e+00> : vector<8x32xf32>
    %13 = tpu.matmul %11, %12, %cst_9 {dimension_numbers = #tpu.dot_dimension_numbers<[1], [0], [0], [1], [0, 0, 1, 1], [], []>} : vector<8x64xbf16>, vector<64x32xbf16>, vector<8x32xf32> -> vector<8x32xf32>
    %c0_10 = arith.constant 0 : index
    %c0_11 = arith.constant 0 : index
    %14 = vector.load %arg5[%c0_10, %c0_11] : memref<1x32xf32, #tpu.memory_space<vmem>>, vector<1x32xf32>
    %15 = vector.broadcast %14 : vector<1x32xf32> to vector<8x32xf32>
    %16 = arith.addf %13, %15 : vector<8x32xf32>
    %cst_12 = arith.constant 0.000000e+00 : f32
    %17 = vector.broadcast %cst_12 : f32 to vector<8x32xf32>
    %18 = arith.cmpf ogt, %16, %17 : vector<8x32xf32>
    %cst_13 = arith.constant 2.000000e-01 : f32
    %19 = vector.broadcast %cst_13 : f32 to vector<8x32xf32>
    %20 = arith.mulf %19, %16 : vector<8x32xf32>
    %21 = arith.select %18, %16, %20 : vector<8x32xi1>, vector<8x32xf32>
    %c0_14 = arith.constant 0 : index
    %c0_15 = arith.constant 0 : index
    %22 = vector.load %arg6[%c0_14, %c0_15] : memref<1x32xbf16, #tpu.memory_space<vmem>>, vector<1x32xbf16>
    %23 = arith.truncf %21 : vector<8x32xf32> to vector<8x32xbf16>
    %cst_16 = arith.constant dense<0.000000e+00> : vector<1x8xf32>
    %24 = tpu.matmul %22, %23, %cst_16 {dimension_numbers = #tpu.dot_dimension_numbers<[1], [1], [0], [0], [0, 0, 1, 0], [], []>} : vector<1x32xbf16>, vector<8x32xbf16>, vector<1x8xf32> -> vector<1x8xf32>
    %c0_17 = arith.constant 0 : index
    %c0_18 = arith.constant 0 : index
    %25 = vector.load %arg7[%c0_17, %c0_18] : memref<1x1xf32, #tpu.memory_space<vmem>>, vector<1x1xf32>
    %26 = vector.broadcast %25 : vector<1x1xf32> to vector<1x8xf32>
    %27 = arith.addf %24, %26 : vector<1x8xf32>
    %c0_19 = arith.constant 0 : index
    %c0_20 = arith.constant 0 : index
    %28 = vector.load %arg8[%c0_19, %c0_20] : memref<1x8xf32, #tpu.memory_space<vmem>>, vector<1x8xf32>
    tpu.vector_store %arg8[%c0_19, %c0_20], %27 {strides = array<i32>} : memref<1x8xf32, #tpu.memory_space<vmem>>, vector<1x8xf32>,
    return
  }
  func.func @transform_0(%arg0: i32) -> (i32, i32) {
    %c0_i32 = arith.constant 0 : i32
    %c0_i32_0 = arith.constant 0 : i32
    return %arg0, %c0_i32 : i32, i32
  }
  func.func @transform_1(%arg0: i32) -> (i32, i32) {
    %c0_i32 = arith.constant 0 : i32
    %c0_i32_0 = arith.constant 0 : i32
    %c0_i32_1 = arith.constant 0 : i32
    return %c0_i32, %c0_i32_0 : i32, i32
  }
  func.func @transform_2(%arg0: i32) -> (i32, i32) {
    %c0_i32 = arith.constant 0 : i32
    %c0_i32_0 = arith.constant 0 : i32
    %c0_i32_1 = arith.constant 0 : i32
    return %c0_i32, %c0_i32_0 : i32, i32
  }
  func.func @transform_3(%arg0: i32) -> (i32, i32) {
    %c0_i32 = arith.constant 0 : i32
    %c0_i32_0 = arith.constant 0 : i32
    %c0_i32_1 = arith.constant 0 : i32
    return %c0_i32, %c0_i32_0 : i32, i32
  }
  func.func @transform_4(%arg0: i32) -> (i32, i32) {
    %c0_i32 = arith.constant 0 : i32
    %c0_i32_0 = arith.constant 0 : i32
    %c0_i32_1 = arith.constant 0 : i32
    return %c0_i32, %c0_i32_0 : i32, i32
  }
  func.func @transform_5(%arg0: i32) -> (i32, i32) {
    %c0_i32 = arith.constant 0 : i32
    %c0_i32_0 = arith.constant 0 : i32
    %c0_i32_1 = arith.constant 0 : i32
    return %c0_i32, %c0_i32_0 : i32, i32
  }
  func.func @transform_6(%arg0: i32) -> (i32, i32) {
    %c0_i32 = arith.constant 0 : i32
    %c0_i32_0 = arith.constant 0 : i32
    %c0_i32_1 = arith.constant 0 : i32
    return %c0_i32, %c0_i32_0 : i32, i32
  }
  func.func @transform_7(%arg0: i32) -> (i32, i32) {
    %c0_i32 = arith.constant 0 : i32
    %c0_i32_0 = arith.constant 0 : i32
    return %arg0, %c0_i32 : i32, i32
  }
}

</mosaic_0001>

<llo_original>
// kernel: ranknet_forward.1
$region0: #{ranknet_forward.1}
  #allocation0 [shape = 'u32[]', space=smem, size = 0x4, offset = 0x4, fixed_abs, tag = 'smem constant byte address 0x4 - core index']
  #allocation1 [shape = 'u32[72,128]{1,0:T(1,128)}', space=vmem, size = 0x9000, scoped, tag = 'internal scratch']
  #allocation2 [shape = 'f32[1,1]{1,0:T(1,128)S(1)}', space=vmem, size = 0x200, scoped, tag = 'scoped memory for ranknet_forward.1']
  %s0 = inlined_call_operand.vmem [shape: bf16[8,501], index: 0, kind: input, shape index: {}]
  %s1 = inlined_call_operand.vmem [shape: bf16[501,64], index: 1, kind: input, shape index: {}]
  %s2 = inlined_call_operand.vmem [shape: f32[1,64], index: 2, kind: input, shape index: {}]
  %s3 = inlined_call_operand.vmem [shape: bf16[64,32], index: 3, kind: input, shape index: {}]
  %s4 = inlined_call_operand.vmem [shape: f32[1,32], index: 4, kind: input, shape index: {}]
  %s5 = inlined_call_operand.vmem [shape: bf16[1,32], index: 5, kind: input, shape index: {}]
  %s6 = inlined_call_operand.<no memory space> [shape: f32[1,1], index: 6, kind: input, shape index: {}]
  %s7 = inlined_call_operand.hbm [shape: f32[1,8], index: 7, kind: output, shape index: {}]
  %s8 = sld [smem:[#allocation0]]
  $region38: #{ranknet_forward.1} parent=0
    _
  %s10 = ssub.s32 1, %s8
  %s11 = scalar_select 0, %s10, %s8
  %v12 = vstv %s6
  %13 = vst [vmem:[#allocation2] sm:$0x1] %v12
  $region1: #{ranknet_forward.1} parent=0
    #allocation3 [shape = 'u8[512]{0}', space=vmem, size = 0x400, scoped, tag = 'output window, operand 0, single buffered']
    #allocation4 [shape = 's32[1]{0}', space=sflag, size = 0x4, scoped, tag = 'scoped memory for ranknet_forward.1']
    %14 = vsyncpa [#allocation4], 0
    // Predicated region
    $region2: #{ranknet_forward.1} parent=1 // pred_check
      _
    $region3: #{ranknet_forward.1} parent=1 // pred_check_branch
      %16 = sbr.rel (0) target = $region5
    $region4: #{ranknet_forward.1} parent=1 // pred_region
      _
    $region5: #{ranknet_forward.1} parent=1 // pred_fallthru
      _
    // Predicated region
    $region6: #{ranknet_forward.1} parent=1 // pred_check
      _
    $region7: #{ranknet_forward.1} parent=1 // pred_check_branch
      %18 = sbr.rel (0) target = $region9
    $region8: #{ranknet_forward.1} parent=1 // pred_region
      _
    $region9: #{ranknet_forward.1} parent=1 // pred_fallthru
      _
    // Predicated region
    $region10: #{ranknet_forward.1} parent=1 // pred_check
      _
    $region11: #{ranknet_forward.1} parent=1 // pred_check_branch
      %20 = sbr.rel (0) target = $region13
    $region12: #{ranknet_forward.1} parent=1 // pred_region
      _
    $region13: #{ranknet_forward.1} parent=1 // pred_fallthru
      _
    // Predicated region
    $region14: #{ranknet_forward.1} parent=1 // pred_check
      _
    $region15: #{ranknet_forward.1} parent=1 // pred_check_branch
      %22 = sbr.rel (0) target = $region17
    $region16: #{ranknet_forward.1} parent=1 // pred_region
      _
    $region17: #{ranknet_forward.1} parent=1 // pred_fallthru
      _
    // Predicated region
    $region18: #{ranknet_forward.1} parent=1 // pred_check
      _
    $region19: #{ranknet_forward.1} parent=1 // pred_check_branch
      %24 = sbr.rel (0) target = $region21
    $region20: #{ranknet_forward.1} parent=1 // pred_region
      _
    $region21: #{ranknet_forward.1} parent=1 // pred_fallthru
      _
    // Predicated region
    $region22: #{ranknet_forward.1} parent=1 // pred_check
      _
    $region23: #{ranknet_forward.1} parent=1 // pred_check_branch
      %26 = sbr.rel (0) target = $region25
    $region24: #{ranknet_forward.1} parent=1 // pred_region
      _
    $region25: #{ranknet_forward.1} parent=1 // pred_fallthru
      _
    // Predicated region
    $region26: #{ranknet_forward.1} parent=1 // pred_check
      _
    $region27: #{ranknet_forward.1} parent=1 // pred_check_branch
      %28 = sbr.rel (0) target = $region29
    $region28: #{ranknet_forward.1} parent=1 // pred_region
      _
    $region29: #{ranknet_forward.1} parent=1 // pred_fallthru
      _
    %v30 = vld [vmem:[%s0] sm:$0xff]
    %v31 = vld [vmem:[%s0 + $0x8] sm:$0xff]
    %v32 = vld [vmem:[%s1] sm:$0xf]
    %v33 = vld [vmem:[%s1 + $0x4] sm:$0xf]
    %v34 = vld [vmem:[%s1 + $0x8] sm:$0xf]
    %v35 = vld [vmem:[%s1 + $0xc] sm:$0xf]
    %v36 = vld [vmem:[%s1 + $0x10] sm:$0xf]
    %v37 = vld [vmem:[%s1 + $0x14] sm:$0xf]
    %v38 = vld [vmem:[%s1 + $0x18] sm:$0xf]
    %v39 = vld [vmem:[%s1 + $0x1c] sm:$0xf]
    %v40 = vld [vmem:[%s1 + $0x20] sm:$0xf]
    %v41 = vld [vmem:[%s1 + $0x24] sm:$0xf]
    %v42 = vld [vmem:[%s1 + $0x28] sm:$0xf]
    %v43 = vld [vmem:[%s1 + $0x2c] sm:$0xf]
    %v44 = vld [vmem:[%s1 + $0x30] sm:$0xf]
    %v45 = vld [vmem:[%s1 + $0x34] sm:$0xf]
    %v46 = vld [vmem:[%s1 + $0x38] sm:$0xf]
    %v47 = vld [vmem:[%s1 + $0x3c] sm:$0xf]
    %v48 = vld [vmem:[%s1 + $0x40] sm:$0xf]
    %v49 = vld [vmem:[%s1 + $0x44] sm:$0xf]
    %v50 = vld [vmem:[%s1 + $0x48] sm:$0xf]
    %v51 = vld [vmem:[%s1 + $0x4c] sm:$0xf]
    %v52 = vld [vmem:[%s1 + $0x50] sm:$0xf]
    %v53 = vld [vmem:[%s1 + $0x54] sm:$0xf]
    %v54 = vld [vmem:[%s1 + $0x58] sm:$0xf]
    %v55 = vld [vmem:[%s1 + $0x5c] sm:$0xf]
    %v56 = vld [vmem:[%s1 + $0x60] sm:$0xf]
    %v57 = vld [vmem:[%s1 + $0x64] sm:$0xf]
    %v58 = vld [vmem:[%s1 + $0x68] sm:$0xf]
    %v59 = vld [vmem:[%s1 + $0x6c] sm:$0xf]
    %v60 = vld [vmem:[%s1 + $0x70] sm:$0xf]
    %v61 = vld [vmem:[%s1 + $0x74] sm:$0xf]
    %v62 = vld [vmem:[%s1 + $0x78] sm:$0xf]
    %v63 = vld [vmem:[%s1 + $0x7c] sm:$0xf]
    %v64 = vld [vmem:[%s1 + $0x80] sm:$0xf]
    %v65 = vld [vmem:[%s1 + $0x84] sm:$0xf]
    %v66 = vld [vmem:[%s1 + $0x88] sm:$0xf]
    %v67 = vld [vmem:[%s1 + $0x8c] sm:$0xf]
    %v68 = vld [vmem:[%s1 + $0x90] sm:$0xf]
    %v69 = vld [vmem:[%s1 + $0x94] sm:$0xf]
    %v70 = vld [vmem:[%s1 + $0x98] sm:$0xf]
    %v71 = vld [vmem:[%s1 + $0x9c] sm:$0xf]
    %v72 = vld [vmem:[%s1 + $0xa0] sm:$0xf]
    %v73 = vld [vmem:[%s1 + $0xa4] sm:$0xf]
    %v74 = vld [vmem:[%s1 + $0xa8] sm:$0xf]
    %v75 = vld [vmem:[%s1 + $0xac] sm:$0xf]
    %v76 = vld [vmem:[%s1 + $0xb0] sm:$0xf]
    %v77 = vld [vmem:[%s1 + $0xb4] sm:$0xf]
    %v78 = vld [vmem:[%s1 + $0xb8] sm:$0xf]
    %v79 = vld [vmem:[%s1 + $0xbc] sm:$0xf]
    %v80 = vld [vmem:[%s1 + $0xc0] sm:$0xf]
    %v81 = vld [vmem:[%s1 + $0xc4] sm:$0xf]
    %v82 = vld [vmem:[%s1 + $0xc8] sm:$0xf]
    %v83 = vld [vmem:[%s1 + $0xcc] sm:$0xf]
    %v84 = vld [vmem:[%s1 + $0xd0] sm:$0xf]
    %v85 = vld [vmem:[%s1 + $0xd4] sm:$0xf]
    %v86 = vld [vmem:[%s1 + $0xd8] sm:$0xf]
    %v87 = vld [vmem:[%s1 + $0xdc] sm:$0xf]
    %v88 = vld [vmem:[%s1 + $0xe0] sm:$0xf]
    %v89 = vld [vmem:[%s1 + $0xe4] sm:$0xf]
    %v90 = vld [vmem:[%s1 + $0xe8] sm:$0xf]
    %v91 = vld [vmem:[%s1 + $0xec] sm:$0xf]
    %v92 = vld [vmem:[%s1 + $0xf0] sm:$0xf]
    %v93 = vld [vmem:[%s1 + $0xf4] sm:$0xf]
    %v94 = vld [vmem:[%s1 + $0xf8] sm:$0x7]
    %v95 = vld [vmem:[%s2] sm:$0x1]
    %v97 = vperm.slane %v95, 0
    %v101 = vunpack.c.l.b16 %v30
    %v102 = vunpack.c.h.b16 %v30
    %v103 = vunpack.c.l.b16 %v31
    %v104 = vunpack.c.h.b16 %v31
    %v105 = vpack.c.b16 %v101, %v101
    %v106 = vpack.c.b16 %v102, %v102
    %v107 = vpack.c.b16 %v103, %v103
    %v108 = vpack.c.b16 %v104, %v104
    %v175 = vunpack.c.l.b16 %v32
    %v176 = vunpack.c.l.b16 %v33
    %v177 = vunpack.c.l.b16 %v34
    %v178 = vunpack.c.l.b16 %v35
    %v179 = vunpack.c.l.b16 %v36
    %v180 = vunpack.c.l.b16 %v37
    %v181 = vunpack.c.l.b16 %v38
    %v182 = vunpack.c.l.b16 %v39
    %v183 = vunpack.c.l.b16 %v40
    %v184 = vunpack.c.l.b16 %v41
    %v185 = vunpack.c.l.b16 %v42
    %v186 = vunpack.c.l.b16 %v43
    %v187 = vunpack.c.l.b16 %v44
    %v188 = vunpack.c.l.b16 %v45
    %v189 = vunpack.c.l.b16 %v46
    %v190 = vunpack.c.l.b16 %v47
    %v191 = vunpack.c.l.b16 %v48
    %v192 = vunpack.c.l.b16 %v49
    %v193 = vunpack.c.l.b16 %v50
    %v194 = vunpack.c.l.b16 %v51
    %v195 = vunpack.c.l.b16 %v52
    %v196 = vunpack.c.l.b16 %v53
    %v197 = vunpack.c.l.b16 %v54
    %v198 = vunpack.c.l.b16 %v55
    %v199 = vunpack.c.l.b16 %v56
    %v200 = vunpack.c.l.b16 %v57
    %v201 = vunpack.c.l.b16 %v58
    %v202 = vunpack.c.l.b16 %v59
    %v203 = vunpack.c.l.b16 %v60
    %v204 = vunpack.c.l.b16 %v61
    %v205 = vunpack.c.l.b16 %v62
    %v206 = vunpack.c.l.b16 %v63
    %v207 = vunpack.c.l.b16 %v64
    %v208 = vunpack.c.l.b16 %v65
    %v209 = vunpack.c.l.b16 %v66
    %v210 = vunpack.c.l.b16 %v67
    %v211 = vunpack.c.l.b16 %v68
    %v212 = vunpack.c.l.b16 %v69
    %v213 = vunpack.c.l.b16 %v70
    %v214 = vunpack.c.l.b16 %v71
    %v215 = vunpack.c.l.b16 %v72
    %v216 = vunpack.c.l.b16 %v73
    %v217 = vunpack.c.l.b16 %v74
    %v218 = vunpack.c.l.b16 %v75
    %v219 = vunpack.c.l.b16 %v76
    %v220 = vunpack.c.l.b16 %v77
    %v221 = vunpack.c.l.b16 %v78
    %v222 = vunpack.c.l.b16 %v79
    %v223 = vunpack.c.l.b16 %v80
    %v224 = vunpack.c.l.b16 %v81
    %v225 = vunpack.c.l.b16 %v82
    %v226 = vunpack.c.l.b16 %v83
    %v227 = vunpack.c.l.b16 %v84
    %v228 = vunpack.c.l.b16 %v85
    %v229 = vunpack.c.l.b16 %v86
    %v230 = vunpack.c.l.b16 %v87
    %v231 = vunpack.c.l.b16 %v88
    %v232 = vunpack.c.l.b16 %v89
    %v233 = vunpack.c.l.b16 %v90
    %v234 = vunpack.c.l.b16 %v91
    %v235 = vunpack.c.l.b16 %v92
    %v236 = vunpack.c.l.b16 %v93
    %v237 = vunpack.c.l.b16 %v94
    %v238 = vpack.c.b16 %v176, %v175
    %v239 = vpack.c.b16 %v178, %v177
    %v240 = vpack.c.b16 %v180, %v179
    %v241 = vpack.c.b16 %v182, %v181
    %v242 = vpack.c.b16 %v184, %v183
    %v243 = vpack.c.b16 %v186, %v185
    %v244 = vpack.c.b16 %v188, %v187
    %v245 = vpack.c.b16 %v190, %v189
    %v246 = vpack.c.b16 %v192, %v191
    %v247 = vpack.c.b16 %v194, %v193
    %v248 = vpack.c.b16 %v196, %v195
    %v249 = vpack.c.b16 %v198, %v197
    %v250 = vpack.c.b16 %v200, %v199
    %v251 = vpack.c.b16 %v202, %v201
    %v252 = vpack.c.b16 %v204, %v203
    %v253 = vpack.c.b16 %v206, %v205
    %v254 = vpack.c.b16 %v208, %v207
    %v255 = vpack.c.b16 %v210, %v209
    %v256 = vpack.c.b16 %v212, %v211
    %v257 = vpack.c.b16 %v214, %v213
    %v258 = vpack.c.b16 %v216, %v215
    %v259 = vpack.c.b16 %v218, %v217
    %v260 = vpack.c.b16 %v220, %v219
    %v261 = vpack.c.b16 %v222, %v221
    %v262 = vpack.c.b16 %v224, %v223
    %v263 = vpack.c.b16 %v226, %v225
    %v264 = vpack.c.b16 %v228, %v227
    %v265 = vpack.c.b16 %v230, %v229
    %v266 = vpack.c.b16 %v232, %v231
    %v267 = vpack.c.b16 %v234, %v233
    %v268 = vpack.c.b16 %v236, %v235
    %v269 = vpack.c.b16 %v237, %v237
    %vm301 = vcmask 957440
    %v303 = vsel %vm301, %v108, 0
    %vm305 = vcmask 1041408
    %vm306 = vcmask 1042432
    %v307 = vsel %vm305, 4294967295, 65535
    %v308 = vsel %vm306, %v307, 0
    %v310 = vand.u32 %v269, %v308
    %312 = vmatpush.bf16.msra.mxu0 %v245
    %313 = vmatpush.bf16.msra.mxu0 %v244
    %314 = vmatpush.bf16.msra.mxu0 %v243
    %315 = vmatpush.bf16.msra.mxu0 %v242
    %316 = vmatpush.bf16.msra.mxu0 %v241
    %317 = vmatpush.bf16.msra.mxu0 %v240
    %318 = vmatpush.bf16.msra.mxu0 %v239
    %319 = vmatpush.bf16.msra.mxu0 %v238
    %320 = vmatmul.bf16.gmra.mxu0 %v105
    %v321 = vpop.f32.mrf.mxu0
    %v322 = vadd.f32 %v97, %v321
    %v323 = vpop.f32.mrf.mxu0
    %324 = vdwg.mxu0
    %325 = vmatpush.bf16.msra.mxu0 %v253
    %326 = vmatpush.bf16.msra.mxu0 %v252
    %327 = vmatpush.bf16.msra.mxu0 %v251
    %328 = vmatpush.bf16.msra.mxu0 %v250
    %329 = vmatpush.bf16.msra.mxu0 %v249
    %330 = vmatpush.bf16.msra.mxu0 %v248
    %331 = vmatpush.bf16.msra.mxu0 %v247
    %332 = vmatpush.bf16.msra.mxu0 %v246
    %333 = vmatmul.bf16.gmra.mxu0 %v106
    %v334 = vpop.f32.mrf.mxu0
    %v335 = vadd.f32 %v322, %v334
    %v336 = vpop.f32.mrf.mxu0
    %337 = vdwg.mxu0
    %338 = vmatpush.bf16.msra.mxu0 %v261
    %339 = vmatpush.bf16.msra.mxu0 %v260
    %340 = vmatpush.bf16.msra.mxu0 %v259
    %341 = vmatpush.bf16.msra.mxu0 %v258
    %342 = vmatpush.bf16.msra.mxu0 %v257
    %343 = vmatpush.bf16.msra.mxu0 %v256
    %344 = vmatpush.bf16.msra.mxu0 %v255
    %345 = vmatpush.bf16.msra.mxu0 %v254
    %346 = vmatmul.bf16.gmra.mxu0 %v107
    %v347 = vpop.f32.mrf.mxu0
    %v348 = vadd.f32 %v335, %v347
    %v349 = vpop.f32.mrf.mxu0
    %350 = vdwg.mxu0
    %351 = vmatpush.bf16.msra.mxu0 %v310
    %352 = vmatpush.bf16.msra.mxu0 %v268
    %353 = vmatpush.bf16.msra.mxu0 %v267
    %354 = vmatpush.bf16.msra.mxu0 %v266
    %355 = vmatpush.bf16.msra.mxu0 %v265
    %356 = vmatpush.bf16.msra.mxu0 %v264
    %357 = vmatpush.bf16.msra.mxu0 %v263
    %358 = vmatpush.bf16.msra.mxu0 %v262
    %359 = vmatmul.bf16.gmra.mxu0 %v303
    %v360 = vpop.f32.mrf.mxu0
    %v361 = vadd.f32 %v348, %v360
    %v362 = vpop.f32.mrf.mxu0
    %363 = vdwg.mxu0
    %vm364 = vcmp.gt.f32.partialorder %v361, 0.0
    %v365 = vmul.f32 %v361, 0.2
    %v366 = vsel %vm364, %v361, %v365
    %v367 = vpack.c.bf16 %v366, %v366
    %v368 = vld [vmem:[%s3] sm:$0xf]
    %v369 = vld [vmem:[%s3 + $0x4] sm:$0xf]
    %v370 = vld [vmem:[%s3 + $0x8] sm:$0xf]
    %v371 = vld [vmem:[%s3 + $0xc] sm:$0xf]
    %v372 = vld [vmem:[%s3 + $0x10] sm:$0xf]
    %v373 = vld [vmem:[%s3 + $0x14] sm:$0xf]
    %v374 = vld [vmem:[%s3 + $0x18] sm:$0xf]
    %v375 = vld [vmem:[%s3 + $0x1c] sm:$0xf]
    %v376 = vld [vmem:[%s4] sm:$0x1]
    %v378 = vperm.slane %v376, 0
    %v388 = vunpack.c.l.b16 %v368
    %v389 = vunpack.c.l.b16 %v369
    %v390 = vunpack.c.l.b16 %v370
    %v391 = vunpack.c.l.b16 %v371
    %v392 = vunpack.c.l.b16 %v372
    %v393 = vunpack.c.l.b16 %v373
    %v394 = vunpack.c.l.b16 %v374
    %v395 = vunpack.c.l.b16 %v375
    %v396 = vpack.c.b16 %v389, %v388
    %v397 = vpack.c.b16 %v391, %v390
    %v398 = vpack.c.b16 %v393, %v392
    %v399 = vpack.c.b16 %v395, %v394
    %vm404 = vcmask 523264
    %v406 = vsel %vm404, %v367, 0
    %408 = vmatpush.bf16.msra.mxu0 0
    %409 = vmatpush.bf16.msra.mxu0 0
    %410 = vmatpush.bf16.msra.mxu0 0
    %411 = vmatpush.bf16.msra.mxu0 0
    %412 = vmatpush.bf16.msra.mxu0 %v399
    %413 = vmatpush.bf16.msra.mxu0 %v398
    %414 = vmatpush.bf16.msra.mxu0 %v397
    %415 = vmatpush.bf16.msra.mxu0 %v396
    %416 = vmatmul.bf16.gmra.mxu0 %v406
    %v417 = vpop.f32.mrf.mxu0
    %v418 = vadd.f32 %v378, %v417
    %v419 = vpop.f32.mrf.mxu0
    %420 = vdwg.mxu0
    %vm421 = vcmp.gt.f32.partialorder %v418, 0.0
    %v422 = vmul.f32 %v418, 0.2
    %v423 = vsel %vm421, %v418, %v422
    %v424 = vld [vmem:[%s5] sm:$0x1]
    %v425 = vpack.c.bf16 %v423, %v423
    %v426 = vld [vmem:[#allocation2] sm:$0x1]
    %428 = vset.pattern.permute.xlu0 0
    %429 = vperm.xlu0 %428, %v426
    %v430 = vpop.permute.xlu0 %429
    %v432 = vperm.slane %v430, 0
    %vm433 = vcmask 261120
    %v435 = vsel %vm433, %v424, 0
    %v438 = vsel %vm433, %v425, 0
    %440 = vmatpush.bf16.xpose.msra.mxu0 0
    %441 = vmatpush.bf16.xpose.msra.mxu0 0
    %442 = vmatpush.bf16.xpose.msra.mxu0 0
    %443 = vmatpush.bf16.xpose.msra.mxu0 0
    %444 = vmatpush.bf16.xpose.msra.mxu0 0
    %445 = vmatpush.bf16.xpose.msra.mxu0 0
    %446 = vmatpush.bf16.xpose.msra.mxu0 0
    %447 = vmatpush.bf16.xpose.msra.mxu0 %v438
    %448 = vmatmul.bf16.gmra.mxu0 %v435
    %v449 = vpop.f32.mrf.mxu0
    %v450 = vadd.f32 %v432, %v449
    %v451 = vpop.f32.mrf.mxu0
    %452 = vdwg.mxu0
    %vm453 = vcmask 57344
    %454 = vst.msk [vmem:[#allocation3] sm:$0x1] %vm453, %v450
    // Predicated region
    $region30: #{ranknet_forward.1} parent=1 // pred_check
      _
    $region31: #{ranknet_forward.1} parent=1 // pred_check_branch
      %456 = sbr.rel (0) target = $region33
    $region32: #{ranknet_forward.1} parent=1 // pred_region
      %458 = vsyncadd [#allocation4], 0
      %s460 = sshll.u32 [#allocation3], 4
      %s461 = int_to_ptr.vmem [resolvable:$true] %s460
      %s462 = sshll.u32 %s7, 4
      %s463 = int_to_ptr.hbm [resolvable:$true] %s462
      %465 = dma.vmem_to_hbm [thread:$0]  %s461, 16, %s463, [#allocation4]
    $region33: #{ranknet_forward.1} parent=1 // pred_fallthru
      _
    // Predicated region
    $region34: #{ranknet_forward.1} parent=1 // pred_check
      _
    $region35: #{ranknet_forward.1} parent=1 // pred_check_branch
      %467 = sbr.rel (0) target = $region37
    $region36: #{ranknet_forward.1} parent=1 // pred_region
      %469 = dma.done [#allocation4], 16
    $region37: #{ranknet_forward.1} parent=1 // pred_fallthru
      _
    %470 = vsyncpa [#allocation4], 1

</llo_original>
